<compile_context>
chip_gen: v5e
topology: v5e:2x2
jax: 0.10.0
libtpu: 0.0.40
codegen_flags: <defaults>
</compile_context>

<pallas_src>
import math

import jax
import jax.numpy as jnp
from jax.experimental import pallas as pl
from jax.experimental.pallas import tpu as pltpu


# ----------------------------------------------------------------------------
# Pallas kernels
# ----------------------------------------------------------------------------

def _round_up(v, m):
    return ((v + m - 1) // m) * m


def _make_mm_kernel(relu, has_res):
    """Fused (X @ W) * scale + bias [+ residual] [+ ReLU]; k-grid + f32 accumulator."""
    def kernel(*refs):
        if has_res:
            x_ref, w_ref, s_ref, b_ref, r_ref, o_ref, acc_ref = refs
        else:
            x_ref, w_ref, s_ref, b_ref, o_ref, acc_ref = refs
            r_ref = None
        k = pl.program_id(2)

        @pl.when(k == 0)
        def _init():
            acc_ref[...] = jnp.zeros_like(acc_ref)

        acc_ref[...] += jnp.dot(x_ref[...], w_ref[...],
                                preferred_element_type=jnp.float32)

        @pl.when(k == pl.num_programs(2) - 1)
        def _fin():
            y = acc_ref[...] * s_ref[...] + b_ref[...]
            if has_res:
                y = y + r_ref[...]
            if relu:
                y = jnp.maximum(y, 0.0)
            o_ref[...] = y

    return kernel


def _make_mm_kernel_single_k(relu, has_res):
    """Fast path for K small enough to live in one tile: no accumulator scratch."""
    def kernel(*refs):
        if has_res:
            x_ref, w_ref, s_ref, b_ref, r_ref, o_ref = refs
        else:
            x_ref, w_ref, s_ref, b_ref, o_ref = refs
            r_ref = None
        y = jnp.dot(x_ref[...], w_ref[...], preferred_element_type=jnp.float32)
        y = y * s_ref[...] + b_ref[...]
        if has_res:
            y = y + r_ref[...]
        if relu:
            y = jnp.maximum(y, 0.0)
        o_ref[...] = y

    return kernel


_TM_DIVISOR_CANDIDATES = (896, 784, 512, 448, 384, 320, 256, 224, 192, 160, 128)
_TK_CANDIDATES = (1024, 768, 512, 384, 256, 128)


def _choose_tm(M):
    """Row tile: always a multiple of 16 (bf16 sublane pack), sized to M."""
    if M <= 256:
        return _round_up(M, 16)                     # single row block
    if M <= 2048:
        return _round_up((M + 1) // 2, 16)          # two row blocks, minimal padding
    for t in _TM_DIVISOR_CANDIDATES:
        if M % t == 0:
            return t
    return 256


def _choose_tk(K):
    """K tile: whole-K for K<=1024, else a 128-aligned divisor; returns (tk, padded_K)."""
    if K <= 1024:
        return K, K
    for t in _TK_CANDIDATES:
        if K % t == 0:
            return t, K
    Kp = _round_up(K, 512)
    return 512, Kp


def matmul_bn_act(x, w, scale, bias, *, relu, residual=None):
    """x: [M, K], w: [K, N], scale/bias: [N] f32, residual: [M, N] f32 or None.

    Computes act((x @ w) * scale + bias [+ residual]) with bf16 MXU operands and a
    float32 accumulator / epilogue.
    """
    M, K = x.shape
    _, Nout = w.shape

    x = x.astype(jnp.bfloat16)
    w = w.astype(jnp.bfloat16)

    tm = _choose_tm(M)
    Mp = _round_up(M, tm)

    # Lane-dense N: pad Cout up to a 128 multiple so output stores are unmasked vst.
    if Nout % 256 == 0:
        tn, Np = 256, Nout
    else:
        Np = _round_up(Nout, 128)
        tn = 128

    tk, Kp = _choose_tk(K)
    nk = Kp // tk

    if Mp != M:
        x = jnp.pad(x, ((0, Mp - M), (0, 0)))
    if Kp != K:
        x = jnp.pad(x, ((0, 0), (0, Kp - K)))
        w = jnp.pad(w, ((0, Kp - K), (0, 0)))
    if Np != Nout:
        w = jnp.pad(w, ((0, 0), (0, Np - Nout)))
        scale = jnp.pad(scale, ((0, Np - Nout),))
        bias = jnp.pad(bias, ((0, Np - Nout),))
    if residual is not None:
        pad_m = Mp - residual.shape[0]
        pad_n = Np - residual.shape[1]
        if pad_m or pad_n:
            residual = jnp.pad(residual, ((0, pad_m), (0, pad_n)))

    scale2 = scale.reshape(1, Np).astype(jnp.float32)
    bias2 = bias.reshape(1, Np).astype(jnp.float32)
    has_res = residual is not None

    if nk == 1:
        kernel = _make_mm_kernel_single_k(relu, has_res)
        in_specs = [
            pl.BlockSpec((tm, tk), lambda i, j: (i, 0)),
            pl.BlockSpec((tk, tn), lambda i, j: (0, j)),
            pl.BlockSpec((1, tn), lambda i, j: (0, j)),
            pl.BlockSpec((1, tn), lambda i, j: (0, j)),
        ]
        args = [x, w, scale2, bias2]
        if has_res:
            in_specs.append(pl.BlockSpec((tm, tn), lambda i, j: (i, j)))
            args.append(residual)
        out = pl.pallas_call(
            kernel,
            out_shape=jax.ShapeDtypeStruct((Mp, Np), jnp.float32),
            grid_spec=pltpu.PrefetchScalarGridSpec(
                num_scalar_prefetch=0,
                grid=(Mp // tm, Np // tn),
                in_specs=in_specs,
                out_specs=pl.BlockSpec((tm, tn), lambda i, j: (i, j)),
            ),
            compiler_params=pltpu.CompilerParams(
                dimension_semantics=("parallel", "parallel")),
        )(*args)
    else:
        kernel = _make_mm_kernel(relu, has_res)
        in_specs = [
            pl.BlockSpec((tm, tk), lambda i, j, k: (i, k)),
            pl.BlockSpec((tk, tn), lambda i, j, k: (k, j)),
            pl.BlockSpec((1, tn), lambda i, j, k: (0, j)),
            pl.BlockSpec((1, tn), lambda i, j, k: (0, j)),
        ]
        args = [x, w, scale2, bias2]
        if has_res:
            in_specs.append(pl.BlockSpec((tm, tn), lambda i, j, k: (i, j)))
            args.append(residual)
        out = pl.pallas_call(
            kernel,
            out_shape=jax.ShapeDtypeStruct((Mp, Np), jnp.float32),
            grid_spec=pltpu.PrefetchScalarGridSpec(
                num_scalar_prefetch=0,
                grid=(Mp // tm, Np // tn, nk),
                in_specs=in_specs,
                out_specs=pl.BlockSpec((tm, tn), lambda i, j, k: (i, j)),
                scratch_shapes=[pltpu.VMEM((tm, tn), jnp.float32)],
            ),
            compiler_params=pltpu.CompilerParams(
                dimension_semantics=("parallel", "parallel", "arbitrary")),
        )(*args)

    if Mp != M or Np != Nout:
        out = out[:M, :Nout]
    return out


# ----------------------------- Sobel edge kernel -----------------------------

_SOBEL_X = ((1.0, 0.0, -1.0), (2.0, 0.0, -2.0), (1.0, 0.0, -1.0))
_SOBEL_Y = ((1.0, 2.0, 1.0), (0.0, 0.0, 0.0), (-1.0, -2.0, -1.0))


def _sobel_kernel(p_ref, o_ref):
    gx = jnp.zeros(o_ref.shape, jnp.float32)
    gy = jnp.zeros(o_ref.shape, jnp.float32)
    for tap in range(9):
        dy, dx = tap // 3, tap % 3
        v = p_ref[tap]
        cx, cy = _SOBEL_X[dy][dx], _SOBEL_Y[dy][dx]
        if cx != 0.0:
            gx = gx + cx * v
        if cy != 0.0:
            gy = gy + cy * v
    o_ref[...] = jnp.clip(jnp.sqrt(gx * gx + gy * gy), 0.0, 1.0)


def _pick_tile(M, cands):
    for t in cands:
        if M % t == 0:
            return t
    return M


def _lane_dense_2d(total):
    """Pick (rows, lanes) with lanes % 128 == 0 and rows % 8 == 0, or None."""
    for lanes in (1024, 896, 768, 640, 512, 448, 384, 256, 128):
        if total % lanes == 0 and (total // lanes) % 8 == 0:
            return total // lanes, lanes
    return None


def sobel_pallas(gray):
    """gray: [N, H, W] -> clamped sobel edge magnitude [N, H, W]."""
    N, H, W = gray.shape
    gp = jnp.pad(gray, ((0, 0), (1, 1), (1, 1)))
    views = [gp[:, dy:dy + H, dx:dx + W] for dy in range(3) for dx in range(3)]
    rl = _lane_dense_2d(N * H * W)
    rows, lanes = rl if rl is not None else (N * H, W)
    stacked = jnp.stack(views, axis=0).reshape(9, rows, lanes)
    tm = _pick_tile(rows, (64, 32, 16, 8))
    out = pl.pallas_call(
        _sobel_kernel,
        out_shape=jax.ShapeDtypeStruct((rows, lanes), jnp.float32),
        grid_spec=pltpu.PrefetchScalarGridSpec(
            num_scalar_prefetch=0,
            grid=(rows // tm,),
            in_specs=[pl.BlockSpec((9, tm, lanes), lambda i: (0, i, 0))],
            out_specs=pl.BlockSpec((tm, lanes), lambda i: (i, 0)),
        ),
        compiler_params=pltpu.CompilerParams(dimension_semantics=("parallel",)),
    )(stacked)
    return out.reshape(N, H, W)


# -------------------------------- max-pool -----------------------------------

def _max9_kernel(x_ref, o_ref):
    o_ref[...] = jnp.max(x_ref[...], axis=0)


def maxpool_pallas(x):
    """MaxPool2d(kernel=3, stride=2, padding=0, ceil_mode=True) on NHWC input."""
    N, H, W, C = x.shape
    Ho = -(-(H - 3) // 2) + 1
    Wo = -(-(W - 3) // 2) + 1
    pad_h = (Ho - 1) * 2 + 3 - H
    pad_w = (Wo - 1) * 2 + 3 - W
    xp = jnp.pad(x, ((0, 0), (0, pad_h), (0, pad_w), (0, 0)),
                 constant_values=-jnp.inf)
    views = [xp[:, dy:dy + 2 * Ho - 1:2, dx:dx + 2 * Wo - 1:2, :]
             for dy in range(3) for dx in range(3)]
    # Lane-dense output view: merge (Wo, C) into the lane dim when it is a 128 multiple.
    if (Wo * C) % 128 == 0 and (N * Ho) % 8 == 0:
        rows, lanes = N * Ho, Wo * C
        tm = _pick_tile(rows, (64, 32, 16, 8))
    else:
        rows, lanes = N * Ho * Wo, C
        tm = _pick_tile(rows, (512, 256, 128, 64, 32, 16, 8))
    stacked = jnp.stack(views, axis=0).reshape(9, rows, lanes)
    out = pl.pallas_call(
        _max9_kernel,
        out_shape=jax.ShapeDtypeStruct((rows, lanes), jnp.float32),
        grid_spec=pltpu.PrefetchScalarGridSpec(
            num_scalar_prefetch=0,
            grid=(rows // tm,),
            in_specs=[pl.BlockSpec((9, tm, lanes), lambda i: (0, i, 0))],
            out_specs=pl.BlockSpec((tm, lanes), lambda i: (i, 0)),
        ),
        compiler_params=pltpu.CompilerParams(dimension_semantics=("parallel",)),
    )(stacked)
    return out.reshape(N, Ho, Wo, C)


# ------------------------------ avgpool + fc head -----------------------------

def _head_kernel(x_ref, w_ref, b_ref, o_ref):
    pooled = jnp.mean(x_ref[...], axis=1)          # AvgPool2d(7) -> [N, C]
    o_ref[...] = jnp.dot(pooled, w_ref[...],
                         preferred_element_type=jnp.float32) + b_ref[...]


def head_pallas(x_spatial_flat, fc_w, fc_b):
    """x_spatial_flat: [N, 49, C]; fc_w: [C, num_classes]; fc_b: [1, num_classes]."""
    N, S, C = x_spatial_flat.shape
    num_classes = fc_w.shape[1]
    return pl.pallas_call(
        _head_kernel,
        out_shape=jax.ShapeDtypeStruct((N, num_classes), jnp.float32),
        grid_spec=pltpu.PrefetchScalarGridSpec(
            num_scalar_prefetch=0,
            grid=(1,),
            in_specs=[
                pl.BlockSpec((N, S, C), lambda i: (0, 0, 0)),
                pl.BlockSpec((C, num_classes), lambda i: (0, 0)),
                pl.BlockSpec((1, num_classes), lambda i: (0, 0)),
            ],
            out_specs=pl.BlockSpec((N, num_classes), lambda i: (0, 0)),
        ),
        compiler_params=pltpu.CompilerParams(dimension_semantics=("arbitrary",)),
    )(x_spatial_flat, fc_w, fc_b)


# ----------------------------------------------------------------------------
# Plain-JAX glue: im2col, BN folding, parameter init, network structure
# ----------------------------------------------------------------------------

def im2col(x, kh, kw, stride, pad):
    """x: NHWC. Returns ([N*Ho*Wo, kh*kw*C], Ho, Wo); tap order (dy, dx, c)."""
    N, H, W, C = x.shape
    Ho = (H + 2 * pad - kh) // stride + 1
    Wo = (W + 2 * pad - kw) // stride + 1
    xp = jnp.pad(x, ((0, 0), (pad, pad), (pad, pad), (0, 0)))
    cols = []
    for dy in range(kh):
        for dx in range(kw):
            cols.append(xp[:, dy:dy + stride * (Ho - 1) + 1:stride,
                           dx:dx + stride * (Wo - 1) + 1:stride, :])
    patches = jnp.concatenate(cols, axis=-1)
    return patches.reshape(N * Ho * Wo, kh * kw * C), Ho, Wo


def bn_fold(bn, eps=1e-5):
    scale = bn["gamma"] / jnp.sqrt(bn["var"] + eps)
    bias = bn["beta"] - bn["mean"] * scale
    return scale, bias


def conv_bn_act(x_nhwc, w_oihw, scale, bias, *, stride, pad, relu, residual=None):
    Cout, Cin, kh, kw = w_oihw.shape
    # im2col in bf16: halves patch HBM traffic and feeds the MXU at bf16 peak.
    patches, Ho, Wo = im2col(x_nhwc.astype(jnp.bfloat16), kh, kw, stride, pad)
    w2d = jnp.transpose(w_oihw, (2, 3, 1, 0)).reshape(kh * kw * Cin, Cout)
    w2d = w2d.astype(jnp.bfloat16)
    res2d = residual.reshape(-1, Cout) if residual is not None else None
    out = matmul_bn_act(patches, w2d, scale, bias, relu=relu, residual=res2d)
    N = x_nhwc.shape[0]
    return out.reshape(N, Ho, Wo, Cout)


def init_conv(key, cout, cin, kh, kw):
    n = kh * kw * cout
    return (jax.random.normal(key, (cout, cin, kh, kw), jnp.float32)
            * math.sqrt(2.0 / n))


def init_bn(c):
    return dict(gamma=jnp.ones((c,), jnp.float32),
                beta=jnp.zeros((c,), jnp.float32),
                mean=jnp.zeros((c,), jnp.float32),
                var=jnp.ones((c,), jnp.float32))


def build_params(key, layers=(1, 1, 1, 1), num_classes=10):
    """Bottleneck (expansion=4) ResNet, cf. resnet50 with configurable depth."""
    keys = iter(jax.random.split(key, 256))
    params = {}
    params["conv1"] = init_conv(next(keys), 64, 3, 7, 7)
    params["bn1"] = init_bn(64)
    inplanes = 64
    for li, (planes, nblocks, stride) in enumerate(
            zip((64, 128, 256, 512), layers, (1, 2, 2, 2)), start=1):
        blocks = []
        for bi in range(nblocks):
            s = stride if bi == 0 else 1
            blk = {"stride": s}
            blk["conv1"] = init_conv(next(keys), planes, inplanes, 1, 1)
            blk["bn1"] = init_bn(planes)
            blk["conv2"] = init_conv(next(keys), planes, planes, 3, 3)
            blk["bn2"] = init_bn(planes)
            blk["conv3"] = init_conv(next(keys), planes * 4, planes, 1, 1)
            blk["bn3"] = init_bn(planes * 4)
            if s != 1 or inplanes != planes * 4:
                blk["dconv"] = init_conv(next(keys), planes * 4, inplanes, 1, 1)
                blk["dbn"] = init_bn(planes * 4)
            inplanes = planes * 4
            blocks.append(blk)
        params[f"layer{li}"] = blocks
    bound = 1.0 / math.sqrt(512 * 4)
    kw_, kb_ = jax.random.split(next(keys))
    params["fc_w"] = jax.random.uniform(kw_, (512 * 4, num_classes),
                                        jnp.float32, -bound, bound)
    params["fc_b"] = jax.random.uniform(kb_, (1, num_classes),
                                        jnp.float32, -bound, bound)
    return params


def bottleneck_forward(x, p):
    stride = p["stride"]
    identity = x
    out = conv_bn_act(x, p["conv1"], *bn_fold(p["bn1"]),
                      stride=1, pad=0, relu=True)
    out = conv_bn_act(out, p["conv2"], *bn_fold(p["bn2"]),
                      stride=stride, pad=1, relu=True)
    if "dconv" in p:
        identity = conv_bn_act(x, p["dconv"], *bn_fold(p["dbn"]),
                               stride=stride, pad=0, relu=False)
    out = conv_bn_act(out, p["conv3"], *bn_fold(p["bn3"]),
                      stride=1, pad=0, relu=True, residual=identity)
    return out


def resnet_dual_forward(params, x_nchw):
    """Input NCHW float32; returns logits [N, num_classes]."""
    N, C, H, W = x_nchw.shape
    assert C == 3, "sobel_process path implemented for 3-channel RGB input"

    # sobel_process: grayscale -> sobel edge magnitude -> clamp.
    gray = (0.2989 * x_nchw[:, 0] + 0.587 * x_nchw[:, 1] + 0.114 * x_nchw[:, 2])
    edge = sobel_pallas(gray)                                   # [N, H, W]

    # All three sobel output channels are identical, so fold conv1's sum over Cin into
    # the weights (K: 7*7*3=147 -> 49) and skip the 3-channel broadcast materialization.
    x = edge[..., None]                                         # [N, H, W, 1] NHWC
    w1 = jnp.sum(params["conv1"], axis=1, keepdims=True)        # [64, 1, 7, 7]

    # conv1 -> bn1 -> relu
    x = conv_bn_act(x, w1, *bn_fold(params["bn1"]),
                    stride=2, pad=3, relu=True)
    # maxpool(3, stride=2, pad=0, ceil_mode=True)
    x = maxpool_pallas(x)

    for lname in ("layer1", "layer2", "layer3", "layer4"):
        for blk in params[lname]:
            x = bottleneck_forward(x, blk)

    # avgpool(7) + flatten + fc  (fused into one Pallas kernel)
    N_, Ho, Wo, Cf = x.shape
    assert Ho == 7 and Wo == 7, "AvgPool2d(7) requires 7x7 final feature map"
    logits = head_pallas(x.reshape(N_, Ho * Wo, Cf),
                         params["fc_w"], params["fc_b"])
    return logits


# ----------------------------------------------------------------------------

if __name__ == "__main__":
    key = jax.random.PRNGKey(0)
    pkey, xkey = jax.random.split(key)

    # Small-but-consistent config: Bottleneck ResNet with layers=[1,1,1,1],
    # num_classes=10.  Spatial size 224 is forced by AvgPool2d(7) in the module.
    params = build_params(pkey, layers=(1, 1, 1, 1), num_classes=10)
    x = jax.random.normal(xkey, (2, 3, 224, 224), jnp.float32)

    logits = resnet_dual_forward(params, x)
    jax.block_until_ready(logits)
    assert logits.shape == (2, 10)
    print("KERNEL_OK")
</pallas_src>

<mosaic_0001>
module attributes {stable_mosaic.version = 11 : i64} {
  func.func @_sobel_kernel(%arg0: i32, %arg1: memref<9x16x896xf32, #tpu.memory_space<vmem>>, %arg2: memref<16x896xf32, #tpu.memory_space<vmem>>) attributes {dimension_semantics = [#tpu.dimension_semantics<parallel>], iteration_bounds = array<i64: 7>, scalar_prefetch = 0 : i64, scratch_operands = 0 : i64, tpu.core_type = #tpu.core_type<tc>, window_params = [{transform_indices = @transform_0, window_bounds = array<i64: 9, 16, 896>}, {transform_indices = @transform_1, window_bounds = array<i64: 16, 896>}]} {
    %cst = arith.constant 0.000000e+00 : f32
    %0 = vector.broadcast %cst : f32 to vector<16x896xf32>
    %cst_0 = arith.constant 0.000000e+00 : f32
    %1 = vector.broadcast %cst_0 : f32 to vector<16x896xf32>
    %c0 = arith.constant 0 : index
    %c0_1 = arith.constant 0 : index
    %c0_2 = arith.constant 0 : index
    %2 = vector.load %arg1[%c0, %c0_1, %c0_2] : memref<9x16x896xf32, #tpu.memory_space<vmem>>, vector<1x16x896xf32>
    %3 = vector.shape_cast %2 : vector<1x16x896xf32> to vector<16x896xf32>
    %cst_3 = arith.constant 1.000000e+00 : f32
    %4 = vector.broadcast %cst_3 : f32 to vector<16x896xf32>
    %5 = arith.mulf %4, %3 : vector<16x896xf32>
    %6 = arith.addf %0, %5 : vector<16x896xf32>
    %cst_4 = arith.constant 1.000000e+00 : f32
    %7 = vector.broadcast %cst_4 : f32 to vector<16x896xf32>
    %8 = arith.mulf %7, %3 : vector<16x896xf32>
    %9 = arith.addf %1, %8 : vector<16x896xf32>
    %c1 = arith.constant 1 : index
    %c0_5 = arith.constant 0 : index
    %c0_6 = arith.constant 0 : index
    %10 = vector.load %arg1[%c1, %c0_5, %c0_6] : memref<9x16x896xf32, #tpu.memory_space<vmem>>, vector<1x16x896xf32>
    %11 = vector.shape_cast %10 : vector<1x16x896xf32> to vector<16x896xf32>
    %cst_7 = arith.constant 2.000000e+00 : f32
    %12 = vector.broadcast %cst_7 : f32 to vector<16x896xf32>
    %13 = arith.mulf %12, %11 : vector<16x896xf32>
    %14 = arith.addf %9, %13 : vector<16x896xf32>
    %c2 = arith.constant 2 : index
    %c0_8 = arith.constant 0 : index
    %c0_9 = arith.constant 0 : index
    %15 = vector.load %arg1[%c2, %c0_8, %c0_9] : memref<9x16x896xf32, #tpu.memory_space<vmem>>, vector<1x16x896xf32>
    %16 = vector.shape_cast %15 : vector<1x16x896xf32> to vector<16x896xf32>
    %cst_10 = arith.constant -1.000000e+00 : f32
    %17 = vector.broadcast %cst_10 : f32 to vector<16x896xf32>
    %18 = arith.mulf %17, %16 : vector<16x896xf32>
    %19 = arith.addf %6, %18 : vector<16x896xf32>
    %cst_11 = arith.constant 1.000000e+00 : f32
    %20 = vector.broadcast %cst_11 : f32 to vector<16x896xf32>
    %21 = arith.mulf %20, %16 : vector<16x896xf32>
    %22 = arith.addf %14, %21 : vector<16x896xf32>
    %c3 = arith.constant 3 : index
    %c0_12 = arith.constant 0 : index
    %c0_13 = arith.constant 0 : index
    %23 = vector.load %arg1[%c3, %c0_12, %c0_13] : memref<9x16x896xf32, #tpu.memory_space<vmem>>, vector<1x16x896xf32>
    %24 = vector.shape_cast %23 : vector<1x16x896xf32> to vector<16x896xf32>
    %cst_14 = arith.constant 2.000000e+00 : f32
    %25 = vector.broadcast %cst_14 : f32 to vector<16x896xf32>
    %26 = arith.mulf %25, %24 : vector<16x896xf32>
    %27 = arith.addf %19, %26 : vector<16x896xf32>
    %c5 = arith.constant 5 : index
    %c0_15 = arith.constant 0 : index
    %c0_16 = arith.constant 0 : index
    %28 = vector.load %arg1[%c5, %c0_15, %c0_16] : memref<9x16x896xf32, #tpu.memory_space<vmem>>, vector<1x16x896xf32>
    %29 = vector.shape_cast %28 : vector<1x16x896xf32> to vector<16x896xf32>
    %cst_17 = arith.constant -2.000000e+00 : f32
    %30 = vector.broadcast %cst_17 : f32 to vector<16x896xf32>
    %31 = arith.mulf %30, %29 : vector<16x896xf32>
    %32 = arith.addf %27, %31 : vector<16x896xf32>
    %c6 = arith.constant 6 : index
    %c0_18 = arith.constant 0 : index
    %c0_19 = arith.constant 0 : index
    %33 = vector.load %arg1[%c6, %c0_18, %c0_19] : memref<9x16x896xf32, #tpu.memory_space<vmem>>, vector<1x16x896xf32>
    %34 = vector.shape_cast %33 : vector<1x16x896xf32> to vector<16x896xf32>
    %cst_20 = arith.constant 1.000000e+00 : f32
    %35 = vector.broadcast %cst_20 : f32 to vector<16x896xf32>
    %36 = arith.mulf %35, %34 : vector<16x896xf32>
    %37 = arith.addf %32, %36 : vector<16x896xf32>
    %cst_21 = arith.constant -1.000000e+00 : f32
    %38 = vector.broadcast %cst_21 : f32 to vector<16x896xf32>
    %39 = arith.mulf %38, %34 : vector<16x896xf32>
    %40 = arith.addf %22, %39 : vector<16x896xf32>
    %c7 = arith.constant 7 : index
    %c0_22 = arith.constant 0 : index
    %c0_23 = arith.constant 0 : index
    %41 = vector.load %arg1[%c7, %c0_22, %c0_23] : memref<9x16x896xf32, #tpu.memory_space<vmem>>, vector<1x16x896xf32>
    %42 = vector.shape_cast %41 : vector<1x16x896xf32> to vector<16x896xf32>
    %cst_24 = arith.constant -2.000000e+00 : f32
    %43 = vector.broadcast %cst_24 : f32 to vector<16x896xf32>
    %44 = arith.mulf %43, %42 : vector<16x896xf32>
    %45 = arith.addf %40, %44 : vector<16x896xf32>
    %c8 = arith.constant 8 : index
    %c0_25 = arith.constant 0 : index
    %c0_26 = arith.constant 0 : index
    %46 = vector.load %arg1[%c8, %c0_25, %c0_26] : memref<9x16x896xf32, #tpu.memory_space<vmem>>, vector<1x16x896xf32>
    %47 = vector.shape_cast %46 : vector<1x16x896xf32> to vector<16x896xf32>
    %cst_27 = arith.constant -1.000000e+00 : f32
    %48 = vector.broadcast %cst_27 : f32 to vector<16x896xf32>
    %49 = arith.mulf %48, %47 : vector<16x896xf32>
    %50 = arith.addf %37, %49 : vector<16x896xf32>
    %cst_28 = arith.constant -1.000000e+00 : f32
    %51 = vector.broadcast %cst_28 : f32 to vector<16x896xf32>
    %52 = arith.mulf %51, %47 : vector<16x896xf32>
    %53 = arith.addf %45, %52 : vector<16x896xf32>
    %54 = arith.mulf %50, %50 : vector<16x896xf32>
    %55 = arith.mulf %53, %53 : vector<16x896xf32>
    %56 = arith.addf %54, %55 : vector<16x896xf32>
    %57 = math.sqrt %56 : vector<16x896xf32>
    %cst_29 = arith.constant 0.000000e+00 : f32
    %cst_30 = arith.constant 1.000000e+00 : f32
    %58 = vector.broadcast %cst_29 : f32 to vector<16x896xf32>
    %59 = arith.maximumf %58, %57 : vector<16x896xf32>
    %60 = vector.broadcast %cst_30 : f32 to vector<16x896xf32>
    %61 = arith.minimumf %60, %59 : vector<16x896xf32>
    %c0_31 = arith.constant 0 : index
    %c0_32 = arith.constant 0 : index
    %62 = vector.load %arg2[%c0_31, %c0_32] : memref<16x896xf32, #tpu.memory_space<vmem>>, vector<16x896xf32>
    tpu.vector_store %arg2[%c0_31, %c0_32], %61 {strides = array<i32>} : memref<16x896xf32, #tpu.memory_space<vmem>>, vector<16x896xf32>,
    return
  }
  func.func @transform_0(%arg0: i32) -> (i32, i32, i32) {
    %c0_i32 = arith.constant 0 : i32
    %c0_i32_0 = arith.constant 0 : i32
    %c0_i32_1 = arith.constant 0 : i32
    return %c0_i32, %arg0, %c0_i32_0 : i32, i32, i32
  }
  func.func @transform_1(%arg0: i32) -> (i32, i32) {
    %c0_i32 = arith.constant 0 : i32
    %c0_i32_0 = arith.constant 0 : i32
    return %arg0, %c0_i32 : i32, i32
  }
}

</mosaic_0001>

<llo_original>
// kernel: tpu_custom_call.1
$region0: #{tpu_custom_call.1}
  #allocation0 [shape = 'u32[]', space=smem, size = 0x4, offset = 0x4, fixed_abs, tag = 'smem constant byte address 0x4 - core index']
  #allocation1 [shape = 'u32[72,128]{1,0:T(1,128)}', space=vmem, size = 0x9000, scoped, tag = 'internal scratch']
  #allocation6 [shape = 's32[]', space=sflag, size = 0x4, offset = 0, fixed_abs, tag = 'sflag constant byte address 0x0 - dummy sync flag']
  %s0 = inlined_call_operand.hbm [shape: f32[9,112,896], index: 0, kind: input, shape index: {}]
  %s1 = inlined_call_operand.hbm [shape: f32[112,896], index: 1, kind: output, shape index: {}]
  %s2 = sld [smem:[#allocation0]]
  $region41: #{tpu_custom_call.1} parent=0
    _
  %s4 = ssub.s32 1, %s2
  %s5 = scalar_select 0, %s4, %s2
  $region1: #{tpu_custom_call.1} parent=0
    #allocation2 [shape = 'u8[1032192]{0}', space=vmem, size = 0xfc000, scoped, tag = 'input window, operand 0']
    #allocation3 [shape = 's32[2]{0}', space=sflag, size = 0x8, scoped, tag = 'scoped memory for tpu_custom_call.1']
    #allocation4 [shape = 's32[2]{0}', space=sflag, size = 0x8, scoped, tag = 'scoped memory for tpu_custom_call.1']
    #allocation5 [shape = 'u8[114688]{0}', space=vmem, size = 0x1c000, scoped, tag = 'output window, operand 0']
    %6 = vsyncpa [#allocation3], 0
    %s7 = scalar_lea.sflag [#allocation3], 1
    %8 = vsyncpa %s7, 0
    %9 = vsyncpa [#allocation4], 0
    %s10 = scalar_lea.sflag [#allocation4], 1
    %11 = vsyncpa %s10, 0
    loop: start=0, step=1, limit=9
    $region2: #{tpu_custom_call.1} parent=1 // loop_pre_header
      _
    $region3: #{tpu_custom_call.1} parent=1 // loop_header
      %s13 = sphi 0, %s17
      %p14 = scmp.ge.s32.totalorder %s13, 9
      %s23 = sphi 0, %s25
      %s26 = sphi 0, %s23
      %s27 = sphi 0, %s26
      %s43 = sphi 0, %s27
      %s49 = sphi 0, %s51
      %s52 = sphi 0, %s49
      %s53 = sphi 0, %s52
      %s69 = sphi 0, %s53
    $region4: #{tpu_custom_call.1} parent=1 // loop_header_branch
      %16 = sbr.rel (%p14) target = $region8
    $region5: #{tpu_custom_call.1} parent=1 // loop_body
      %s18 = ssub.s32 %s13, 1
      %s19 = ssub.s32 %s13, 2
      %s20 = sadd.s32 %s13, 1
      %s21 = ssub.s32 %s13, %s20
      %p22 = scmp.eq.s32.totalorder %s21, 0
      %s24 = sadd.s32 %s23, 1
      %s25 = scalar_select %p22, %s23, %s24
      %p28 = pneg %p22
      %p29 = scmp.eq.s32.totalorder %s13, 6
      %p30 = por %p28, %p29
      %p31 = scmp.ne.s32.totalorder %s23, %s26
      %p32 = scmp.eq.s32.totalorder %s13, 0
      %p33 = por %p31, %p32
      %p34 = scmp.ne.s32.totalorder %s23, %s26
      %p35 = scmp.eq.s32.totalorder %s18, 6
      %p36 = por %p34, %p35
      %p37 = scmp.ne.s32.totalorder %s26, %s27
      %p38 = scmp.eq.s32.totalorder %s18, 0
      %p39 = por %p37, %p38
      %p40 = scmp.ne.s32.totalorder %s26, %s27
      %p41 = scmp.eq.s32.totalorder %s19, 6
      %p42 = por %p40, %p41
      %p44 = scmp.ne.s32.totalorder %s27, %s43
      %p45 = scmp.eq.s32.totalorder %s19, 0
      %p46 = por %p44, %p45
      %s47 = ssub.s32 %s13, %s20
      %p48 = scmp.eq.s32.totalorder %s47, 0
      %s50 = sadd.s32 %s49, 1
      %s51 = scalar_select %p48, %s49, %s50
      %p54 = pneg %p48
      %p55 = scmp.eq.s32.totalorder %s13, 6
      %p56 = por %p54, %p55
      %p57 = scmp.ne.s32.totalorder %s49, %s52
      %p58 = scmp.eq.s32.totalorder %s13, 0
      %p59 = por %p57, %p58
      %p60 = scmp.ne.s32.totalorder %s49, %s52
      %p61 = scmp.eq.s32.totalorder %s18, 6
      %p62 = por %p60, %p61
      %p63 = scmp.ne.s32.totalorder %s52, %s53
      %p64 = scmp.eq.s32.totalorder %s18, 0
      %p65 = por %p63, %p64
      %p66 = scmp.ne.s32.totalorder %s52, %s53
      %p67 = scmp.eq.s32.totalorder %s19, 6
      %p68 = por %p66, %p67
      %p70 = scmp.ne.s32.totalorder %s53, %s69
      %p71 = scmp.eq.s32.totalorder %s19, 0
      %p72 = por %p70, %p71
      %p73 = scmp.le.s32.totalorder 1, %s13
      %p74 = scmp.lt.s32.totalorder %s13, 8
      %p75 = pnand %p73, %p74
      %p76 = pneg %p75
      // Predicated region
      $region9: #{tpu_custom_call.1} parent=5 // pred_check
        _
      $region10: #{tpu_custom_call.1} parent=5 // pred_check_branch
        %78 = sbr.rel (%p75) target = $region12
      $region11: #{tpu_custom_call.1} parent=5 // pred_region
        %s79 = ssub.s32 %s13, 1
      $region12: #{tpu_custom_call.1} parent=5 // pred_fallthru
        _
      %p80 = scmp.lt.s32.totalorder %s13, 7
      // Predicated region
      $region13: #{tpu_custom_call.1} parent=5 // pred_check
        %p81 = pneg %p80
      $region14: #{tpu_custom_call.1} parent=5 // pred_check_branch
        %83 = sbr.rel (%p81) target = $region16
      $region15: #{tpu_custom_call.1} parent=5 // pred_region
        // Predicated region
        $region17: #{tpu_custom_call.1} parent=15 // pred_check
          %p84 = pneg %p33
        $region18: #{tpu_custom_call.1} parent=15 // pred_check_branch
          %86 = sbr.rel (%p84) target = $region20
        $region19: #{tpu_custom_call.1} parent=15 // pred_region
          #allocation7 [shape = 'u32[6]{0}', space=smem, size = 0x18, scoped, tag = 'DMA stride descriptor']
          %s87 = sand.u32 %s23, 1
          %s88 = scalar_lea.sflag [#allocation3], %s87
          %s89 = sand.u32 %s23, 1
          %s90 = smul.addr %s89, 1008
          %s91 = scalar_lea.vmem [#allocation2], %s90
          %s92 = smul.u32 2, %s13
          %94 = vsyncadd %s88, 0
          %s95 = smul.addr %s92, 7
          %s96 = smul.addr %s95, 8
          %s97 = scalar_lea.hbm %s0, %s96
          %s99 = sshll.u32 1, 14
          %s100 = sxor.u32 4294967295, %s99
          %s102 = sld [smem:[#allocation0]]
          %s103 = sadd.s32 2, %s102
          %s105 = sshll.u32 7, 26
          %s106 = sxor.u32 4294967295, %s105
          %s107 = sand.u32 0, %s106
          %s108 = sshll.u32 %s103, 26
          %s109 = sor.u32 %s107, %s108
          %s110 = sshll.u32 %s97, 4
          %s111 = int_to_ptr.hbm [resolvable:$true] %s110
          %s112 = sshll.u32 %s91, 4
          %s113 = int_to_ptr.vmem [resolvable:$true] %s112
          %119 = sst [smem:[#allocation7]] 12544
          %s120 = scalar_lea.smem [#allocation7], 1
          %121 = sst [smem:[%s120]] 1792
          %s122 = scalar_lea.smem [#allocation7], 2
          %123 = sst [smem:[%s122]] 2
          %s124 = scalar_lea.smem [#allocation7], 3
          %125 = sst [smem:[%s124]] 896
          %s126 = scalar_lea.smem [#allocation7], 4
          %127 = sst [smem:[%s126]] 896
          %s128 = scalar_lea.smem [#allocation7], 5
          %129 = sst [smem:[%s128]] 56
          %131 = dma.general %s111, 16128, %s113, %s88, [#allocation6], [#allocation7], %s109, 0
        $region20: #{tpu_custom_call.1} parent=15 // pred_fallthru
          _
      $region16: #{tpu_custom_call.1} parent=5 // pred_fallthru
        _
      %p132 = scmp.le.s32.totalorder 1, %s13
      %p133 = scmp.lt.s32.totalorder %s13, 8
      %p134 = pnand %p132, %p133
      %p135 = pneg %p134
      // Predicated region
      $region21: #{tpu_custom_call.1} parent=5 // pred_check
        _
      $region22: #{tpu_custom_call.1} parent=5 // pred_check_branch
        %137 = sbr.rel (%p134) target = $region24
      $region23: #{tpu_custom_call.1} parent=5 // pred_region
        %s138 = ssub.s32 %s13, 1
        %s139 = sand.u32 %s26, 1
        %s140 = scalar_lea.sflag [#allocation3], %s139
        %s141 = sand.u32 %s26, 1
        %s142 = smul.addr %s141, 1008
        %s143 = scalar_lea.vmem [#allocation2], %s142
        // Predicated region
        $region25: #{tpu_custom_call.1} parent=23 // pred_check
          %p144 = pneg %p39
        $region26: #{tpu_custom_call.1} parent=23 // pred_check_branch
          %146 = sbr.rel (%p144) target = $region28
        $region27: #{tpu_custom_call.1} parent=23 // pred_region
          %148 = dma.done %s140, 16128
        $region28: #{tpu_custom_call.1} parent=23 // pred_fallthru
          _
        %s149 = sand.u32 %s26, 1
        %s150 = scalar_lea.sflag [#allocation3], %s149
        %s151 = sand.u32 %s26, 1
        %s152 = smul.addr %s151, 1008
        %s153 = scalar_lea.vmem [#allocation2], %s152
        %p154 = pneg %p39
        %p155 = pneg %p36
        %p156 = pneg %p65
        %p157 = pneg %p62
        %s158 = sand.u32 %s52, 1
        %s159 = scalar_lea.sflag [#allocation4], %s158
        %s160 = sand.u32 %s52, 1
        %s161 = smul.addr %s160, 112
        %s162 = scalar_lea.vmem [#allocation5], %s161
        %s163 = smul.u32 2, %s18
        %s164 = smul.u32 2, %s18
        %v165 = vld [vmem:[%s143] sm:$0xff]
        %v166 = vld [vmem:[%s143 + $0x8] sm:$0xff]
        %v167 = vld [vmem:[%s143 + $0x10] sm:$0xff]
        %v168 = vld [vmem:[%s143 + $0x18] sm:$0xff]
        %v169 = vld [vmem:[%s143 + $0x20] sm:$0xff]
        %v170 = vld [vmem:[%s143 + $0x28] sm:$0xff]
        %v171 = vld [vmem:[%s143 + $0x30] sm:$0xff]
        %v172 = vld [vmem:[%s143 + $0x38] sm:$0xff]
        %v173 = vld [vmem:[%s143 + $0x40] sm:$0xff]
        %v174 = vld [vmem:[%s143 + $0x48] sm:$0xff]
        %v175 = vld [vmem:[%s143 + $0x50] sm:$0xff]
        %v176 = vld [vmem:[%s143 + $0x58] sm:$0xff]
        %v177 = vld [vmem:[%s143 + $0x60] sm:$0xff]
        %v178 = vld [vmem:[%s143 + $0x68] sm:$0xff]
        %v179 = vadd.f32 %v165, 0.0
        %v180 = vadd.f32 %v166, 0.0
        %v181 = vadd.f32 %v167, 0.0
        %v182 = vadd.f32 %v168, 0.0
        %v183 = vadd.f32 %v169, 0.0
        %v184 = vadd.f32 %v170, 0.0
        %v185 = vadd.f32 %v171, 0.0
        %v186 = vadd.f32 %v172, 0.0
        %v187 = vadd.f32 %v173, 0.0
        %v188 = vadd.f32 %v174, 0.0
        %v189 = vadd.f32 %v175, 0.0
        %v190 = vadd.f32 %v176, 0.0
        %v191 = vadd.f32 %v177, 0.0
        %v192 = vadd.f32 %v178, 0.0
        %s193 = scalar_lea.vmem %s143, 112 [#allocation2]
        %v194 = vld [vmem:[%s193] sm:$0xff]
        %v195 = vld [vmem:[%s193 + $0x8] sm:$0xff]
        %v196 = vld [vmem:[%s193 + $0x10] sm:$0xff]
        %v197 = vld [vmem:[%s193 + $0x18] sm:$0xff]
        %v198 = vld [vmem:[%s193 + $0x20] sm:$0xff]
        %v199 = vld [vmem:[%s193 + $0x28] sm:$0xff]
        %v200 = vld [vmem:[%s193 + $0x30] sm:$0xff]
        %v201 = vld [vmem:[%s193 + $0x38] sm:$0xff]
        %v202 = vld [vmem:[%s193 + $0x40] sm:$0xff]
        %v203 = vld [vmem:[%s193 + $0x48] sm:$0xff]
        %v204 = vld [vmem:[%s193 + $0x50] sm:$0xff]
        %v205 = vld [vmem:[%s193 + $0x58] sm:$0xff]
        %v206 = vld [vmem:[%s193 + $0x60] sm:$0xff]
        %v207 = vld [vmem:[%s193 + $0x68] sm:$0xff]
        %v208 = vmul.f32 %v194, 2.0
        %v209 = vmul.f32 %v195, 2.0
        %v210 = vmul.f32 %v196, 2.0
        %v211 = vmul.f32 %v197, 2.0
        %v212 = vmul.f32 %v198, 2.0
        %v213 = vmul.f32 %v199, 2.0
        %v214 = vmul.f32 %v200, 2.0
        %v215 = vmul.f32 %v201, 2.0
        %v216 = vmul.f32 %v202, 2.0
        %v217 = vmul.f32 %v203, 2.0
        %v218 = vmul.f32 %v204, 2.0
        %v219 = vmul.f32 %v205, 2.0
        %v220 = vmul.f32 %v206, 2.0
        %v221 = vmul.f32 %v207, 2.0
        %v222 = vadd.f32 %v179, %v208
        %v223 = vadd.f32 %v180, %v209
        %v224 = vadd.f32 %v181, %v210
        %v225 = vadd.f32 %v182, %v211
        %v226 = vadd.f32 %v183, %v212
        %v227 = vadd.f32 %v184, %v213
        %v228 = vadd.f32 %v185, %v214
        %v229 = vadd.f32 %v186, %v215
        %v230 = vadd.f32 %v187, %v216
        %v231 = vadd.f32 %v188, %v217
        %v232 = vadd.f32 %v189, %v218
        %v233 = vadd.f32 %v190, %v219
        %v234 = vadd.f32 %v191, %v220
        %v235 = vadd.f32 %v192, %v221
        %s236 = scalar_lea.vmem %s143, 224 [#allocation2]
        %v237 = vld [vmem:[%s236] sm:$0xff]
        %v238 = vld [vmem:[%s236 + $0x8] sm:$0xff]
        %v239 = vld [vmem:[%s236 + $0x10] sm:$0xff]
        %v240 = vld [vmem:[%s236 + $0x18] sm:$0xff]
        %v241 = vld [vmem:[%s236 + $0x20] sm:$0xff]
        %v242 = vld [vmem:[%s236 + $0x28] sm:$0xff]
        %v243 = vld [vmem:[%s236 + $0x30] sm:$0xff]
        %v244 = vld [vmem:[%s236 + $0x38] sm:$0xff]
        %v245 = vld [vmem:[%s236 + $0x40] sm:$0xff]
        %v246 = vld [vmem:[%s236 + $0x48] sm:$0xff]
        %v247 = vld [vmem:[%s236 + $0x50] sm:$0xff]
        %v248 = vld [vmem:[%s236 + $0x58] sm:$0xff]
        %v249 = vld [vmem:[%s236 + $0x60] sm:$0xff]
        %v250 = vld [vmem:[%s236 + $0x68] sm:$0xff]
        %v251 = vmul.f32 %v237, -1.0
        %v252 = vmul.f32 %v238, -1.0
        %v253 = vmul.f32 %v239, -1.0
        %v254 = vmul.f32 %v240, -1.0
        %v255 = vmul.f32 %v241, -1.0
        %v256 = vmul.f32 %v242, -1.0
        %v257 = vmul.f32 %v243, -1.0
        %v258 = vmul.f32 %v244, -1.0
        %v259 = vmul.f32 %v245, -1.0
        %v260 = vmul.f32 %v246, -1.0
        %v261 = vmul.f32 %v247, -1.0
        %v262 = vmul.f32 %v248, -1.0
        %v263 = vmul.f32 %v249, -1.0
        %v264 = vmul.f32 %v250, -1.0
        %v265 = vadd.f32 %v179, %v251
        %v266 = vadd.f32 %v180, %v252
        %v267 = vadd.f32 %v181, %v253
        %v268 = vadd.f32 %v182, %v254
        %v269 = vadd.f32 %v183, %v255
        %v270 = vadd.f32 %v184, %v256
        %v271 = vadd.f32 %v185, %v257
        %v272 = vadd.f32 %v186, %v258
        %v273 = vadd.f32 %v187, %v259
        %v274 = vadd.f32 %v188, %v260
        %v275 = vadd.f32 %v189, %v261
        %v276 = vadd.f32 %v190, %v262
        %v277 = vadd.f32 %v191, %v263
        %v278 = vadd.f32 %v192, %v264
        %v279 = vadd.f32 %v222, %v237
        %v280 = vadd.f32 %v223, %v238
        %v281 = vadd.f32 %v224, %v239
        %v282 = vadd.f32 %v225, %v240
        %v283 = vadd.f32 %v226, %v241
        %v284 = vadd.f32 %v227, %v242
        %v285 = vadd.f32 %v228, %v243
        %v286 = vadd.f32 %v229, %v244
        %v287 = vadd.f32 %v230, %v245
        %v288 = vadd.f32 %v231, %v246
        %v289 = vadd.f32 %v232, %v247
        %v290 = vadd.f32 %v233, %v248
        %v291 = vadd.f32 %v234, %v249
        %v292 = vadd.f32 %v235, %v250
        %s293 = scalar_lea.vmem %s143, 336 [#allocation2]
        %v294 = vld [vmem:[%s293] sm:$0xff]
        %v295 = vld [vmem:[%s293 + $0x8] sm:$0xff]
        %v296 = vld [vmem:[%s293 + $0x10] sm:$0xff]
        %v297 = vld [vmem:[%s293 + $0x18] sm:$0xff]
        %v298 = vld [vmem:[%s293 + $0x20] sm:$0xff]
        %v299 = vld [vmem:[%s293 + $0x28] sm:$0xff]
        %v300 = vld [vmem:[%s293 + $0x30] sm:$0xff]
        %v301 = vld [vmem:[%s293 + $0x38] sm:$0xff]
        %v302 = vld [vmem:[%s293 + $0x40] sm:$0xff]
        %v303 = vld [vmem:[%s293 + $0x48] sm:$0xff]
        %v304 = vld [vmem:[%s293 + $0x50] sm:$0xff]
        %v305 = vld [vmem:[%s293 + $0x58] sm:$0xff]
        %v306 = vld [vmem:[%s293 + $0x60] sm:$0xff]
        %v307 = vld [vmem:[%s293 + $0x68] sm:$0xff]
        %v308 = vmul.f32 %v294, 2.0
        %v309 = vmul.f32 %v295, 2.0
        %v310 = vmul.f32 %v296, 2.0
        %v311 = vmul.f32 %v297, 2.0
        %v312 = vmul.f32 %v298, 2.0
        %v313 = vmul.f32 %v299, 2.0
        %v314 = vmul.f32 %v300, 2.0
        %v315 = vmul.f32 %v301, 2.0
        %v316 = vmul.f32 %v302, 2.0
        %v317 = vmul.f32 %v303, 2.0
        %v318 = vmul.f32 %v304, 2.0
        %v319 = vmul.f32 %v305, 2.0
        %v320 = vmul.f32 %v306, 2.0
        %v321 = vmul.f32 %v307, 2.0
        %v322 = vadd.f32 %v265, %v308
        %v323 = vadd.f32 %v266, %v309
        %v324 = vadd.f32 %v267, %v310
        %v325 = vadd.f32 %v268, %v311
        %v326 = vadd.f32 %v269, %v312
        %v327 = vadd.f32 %v270, %v313
        %v328 = vadd.f32 %v271, %v314
        %v329 = vadd.f32 %v272, %v315
        %v330 = vadd.f32 %v273, %v316
        %v331 = vadd.f32 %v274, %v317
        %v332 = vadd.f32 %v275, %v318
        %v333 = vadd.f32 %v276, %v319
        %v334 = vadd.f32 %v277, %v320
        %v335 = vadd.f32 %v278, %v321
        %s336 = scalar_lea.vmem %s143, 560 [#allocation2]
        %v337 = vld [vmem:[%s336] sm:$0xff]
        %v338 = vld [vmem:[%s336 + $0x8] sm:$0xff]
        %v339 = vld [vmem:[%s336 + $0x10] sm:$0xff]
        %v340 = vld [vmem:[%s336 + $0x18] sm:$0xff]
        %v341 = vld [vmem:[%s336 + $0x20] sm:$0xff]
        %v342 = vld [vmem:[%s336 + $0x28] sm:$0xff]
        %v343 = vld [vmem:[%s336 + $0x30] sm:$0xff]
        %v344 = vld [vmem:[%s336 + $0x38] sm:$0xff]
        %v345 = vld [vmem:[%s336 + $0x40] sm:$0xff]
        %v346 = vld [vmem:[%s336 + $0x48] sm:$0xff]
        %v347 = vld [vmem:[%s336 + $0x50] sm:$0xff]
        %v348 = vld [vmem:[%s336 + $0x58] sm:$0xff]
        %v349 = vld [vmem:[%s336 + $0x60] sm:$0xff]
        %v350 = vld [vmem:[%s336 + $0x68] sm:$0xff]
        %v351 = vmul.f32 %v337, -2.0
        %v352 = vmul.f32 %v338, -2.0
        %v353 = vmul.f32 %v339, -2.0
        %v354 = vmul.f32 %v340, -2.0
        %v355 = vmul.f32 %v341, -2.0
        %v356 = vmul.f32 %v342, -2.0
        %v357 = vmul.f32 %v343, -2.0
        %v358 = vmul.f32 %v344, -2.0
        %v359 = vmul.f32 %v345, -2.0
        %v360 = vmul.f32 %v346, -2.0
        %v361 = vmul.f32 %v347, -2.0
        %v362 = vmul.f32 %v348, -2.0
        %v363 = vmul.f32 %v349, -2.0
        %v364 = vmul.f32 %v350, -2.0
        %v365 = vadd.f32 %v322, %v351
        %v366 = vadd.f32 %v323, %v352
        %v367 = vadd.f32 %v324, %v353
        %v368 = vadd.f32 %v325, %v354
        %v369 = vadd.f32 %v326, %v355
        %v370 = vadd.f32 %v327, %v356
        %v371 = vadd.f32 %v328, %v357
        %v372 = vadd.f32 %v329, %v358
        %v373 = vadd.f32 %v330, %v359
        %v374 = vadd.f32 %v331, %v360
        %v375 = vadd.f32 %v332, %v361
        %v376 = vadd.f32 %v333, %v362
        %v377 = vadd.f32 %v334, %v363
        %v378 = vadd.f32 %v335, %v364
        %s379 = scalar_lea.vmem %s143, 672 [#allocation2]
        %v380 = vld [vmem:[%s379] sm:$0xff]
        %v381 = vld [vmem:[%s379 + $0x8] sm:$0xff]
        %v382 = vld [vmem:[%s379 + $0x10] sm:$0xff]
        %v383 = vld [vmem:[%s379 + $0x18] sm:$0xff]
        %v384 = vld [vmem:[%s379 + $0x20] sm:$0xff]
        %v385 = vld [vmem:[%s379 + $0x28] sm:$0xff]
        %v386 = vld [vmem:[%s379 + $0x30] sm:$0xff]
        %v387 = vld [vmem:[%s379 + $0x38] sm:$0xff]
        %v388 = vld [vmem:[%s379 + $0x40] sm:$0xff]
        %v389 = vld [vmem:[%s379 + $0x48] sm:$0xff]
        %v390 = vld [vmem:[%s379 + $0x50] sm:$0xff]
        %v391 = vld [vmem:[%s379 + $0x58] sm:$0xff]
        %v392 = vld [vmem:[%s379 + $0x60] sm:$0xff]
        %v393 = vld [vmem:[%s379 + $0x68] sm:$0xff]
        %v394 = vadd.f32 %v365, %v380
        %v395 = vadd.f32 %v366, %v381
        %v396 = vadd.f32 %v367, %v382
        %v397 = vadd.f32 %v368, %v383
        %v398 = vadd.f32 %v369, %v384
        %v399 = vadd.f32 %v370, %v385
        %v400 = vadd.f32 %v371, %v386
        %v401 = vadd.f32 %v372, %v387
        %v402 = vadd.f32 %v373, %v388
        %v403 = vadd.f32 %v374, %v389
        %v404 = vadd.f32 %v375, %v390
        %v405 = vadd.f32 %v376, %v391
        %v406 = vadd.f32 %v377, %v392
        %v407 = vadd.f32 %v378, %v393
        %v408 = vmul.f32 %v380, -1.0
        %v409 = vmul.f32 %v381, -1.0
        %v410 = vmul.f32 %v382, -1.0
        %v411 = vmul.f32 %v383, -1.0
        %v412 = vmul.f32 %v384, -1.0
        %v413 = vmul.f32 %v385, -1.0
        %v414 = vmul.f32 %v386, -1.0
        %v415 = vmul.f32 %v387, -1.0
        %v416 = vmul.f32 %v388, -1.0
        %v417 = vmul.f32 %v389, -1.0
        %v418 = vmul.f32 %v390, -1.0
        %v419 = vmul.f32 %v391, -1.0
        %v420 = vmul.f32 %v392, -1.0
        %v421 = vmul.f32 %v393, -1.0
        %v422 = vadd.f32 %v279, %v408
        %v423 = vadd.f32 %v280, %v409
        %v424 = vadd.f32 %v281, %v410
        %v425 = vadd.f32 %v282, %v411
        %v426 = vadd.f32 %v283, %v412
        %v427 = vadd.f32 %v284, %v413
        %v428 = vadd.f32 %v285, %v414
        %v429 = vadd.f32 %v286, %v415
        %v430 = vadd.f32 %v287, %v416
        %v431 = vadd.f32 %v288, %v417
        %v432 = vadd.f32 %v289, %v418
        %v433 = vadd.f32 %v290, %v419
        %v434 = vadd.f32 %v291, %v420
        %v435 = vadd.f32 %v292, %v421
        %s436 = scalar_lea.vmem %s143, 784 [#allocation2]
        %v437 = vld [vmem:[%s436] sm:$0xff]
        %v438 = vld [vmem:[%s436 + $0x8] sm:$0xff]
        %v439 = vld [vmem:[%s436 + $0x10] sm:$0xff]
        %v440 = vld [vmem:[%s436 + $0x18] sm:$0xff]
        %v441 = vld [vmem:[%s436 + $0x20] sm:$0xff]
        %v442 = vld [vmem:[%s436 + $0x28] sm:$0xff]
        %v443 = vld [vmem:[%s436 + $0x30] sm:$0xff]
        %v444 = vld [vmem:[%s436 + $0x38] sm:$0xff]
        %v445 = vld [vmem:[%s436 + $0x40] sm:$0xff]
        %v446 = vld [vmem:[%s436 + $0x48] sm:$0xff]
        %v447 = vld [vmem:[%s436 + $0x50] sm:$0xff]
        %v448 = vld [vmem:[%s436 + $0x58] sm:$0xff]
        %v449 = vld [vmem:[%s436 + $0x60] sm:$0xff]
        %v450 = vld [vmem:[%s436 + $0x68] sm:$0xff]
        %v451 = vmul.f32 %v437, -2.0
        %v452 = vmul.f32 %v438, -2.0
        %v453 = vmul.f32 %v439, -2.0
        %v454 = vmul.f32 %v440, -2.0
        %v455 = vmul.f32 %v441, -2.0
        %v456 = vmul.f32 %v442, -2.0
        %v457 = vmul.f32 %v443, -2.0
        %v458 = vmul.f32 %v444, -2.0
        %v459 = vmul.f32 %v445, -2.0
        %v460 = vmul.f32 %v446, -2.0
        %v461 = vmul.f32 %v447, -2.0
        %v462 = vmul.f32 %v448, -2.0
        %v463 = vmul.f32 %v449, -2.0
        %v464 = vmul.f32 %v450, -2.0
        %v465 = vadd.f32 %v422, %v451
        %v466 = vadd.f32 %v423, %v452
        %v467 = vadd.f32 %v424, %v453
        %v468 = vadd.f32 %v425, %v454
        %v469 = vadd.f32 %v426, %v455
        %v470 = vadd.f32 %v427, %v456
        %v471 = vadd.f32 %v428, %v457
        %v472 = vadd.f32 %v429, %v458
        %v473 = vadd.f32 %v430, %v459
        %v474 = vadd.f32 %v431, %v460
        %v475 = vadd.f32 %v432, %v461
        %v476 = vadd.f32 %v433, %v462
        %v477 = vadd.f32 %v434, %v463
        %v478 = vadd.f32 %v435, %v464
        %s479 = scalar_lea.vmem %s143, 896 [#allocation2]
        %v480 = vld [vmem:[%s479] sm:$0xff]
        %v481 = vld [vmem:[%s479 + $0x8] sm:$0xff]
        %v482 = vld [vmem:[%s479 + $0x10] sm:$0xff]
        %v483 = vld [vmem:[%s479 + $0x18] sm:$0xff]
        %v484 = vld [vmem:[%s479 + $0x20] sm:$0xff]
        %v485 = vld [vmem:[%s479 + $0x28] sm:$0xff]
        %v486 = vld [vmem:[%s479 + $0x30] sm:$0xff]
        %v487 = vld [vmem:[%s479 + $0x38] sm:$0xff]
        %v488 = vld [vmem:[%s479 + $0x40] sm:$0xff]
        %v489 = vld [vmem:[%s479 + $0x48] sm:$0xff]
        %v490 = vld [vmem:[%s479 + $0x50] sm:$0xff]
        %v491 = vld [vmem:[%s479 + $0x58] sm:$0xff]
        %v492 = vld [vmem:[%s479 + $0x60] sm:$0xff]
        %v493 = vld [vmem:[%s479 + $0x68] sm:$0xff]
        %v494 = vmul.f32 %v480, -1.0
        %v495 = vmul.f32 %v481, -1.0
        %v496 = vmul.f32 %v482, -1.0
        %v497 = vmul.f32 %v483, -1.0
        %v498 = vmul.f32 %v484, -1.0
        %v499 = vmul.f32 %v485, -1.0
        %v500 = vmul.f32 %v486, -1.0
        %v501 = vmul.f32 %v487, -1.0
        %v502 = vmul.f32 %v488, -1.0
        %v503 = vmul.f32 %v489, -1.0
        %v504 = vmul.f32 %v490, -1.0
        %v505 = vmul.f32 %v491, -1.0
        %v506 = vmul.f32 %v492, -1.0
        %v507 = vmul.f32 %v493, -1.0
        %v508 = vadd.f32 %v394, %v494
        %v509 = vadd.f32 %v395, %v495
        %v510 = vadd.f32 %v396, %v496
        %v511 = vadd.f32 %v397, %v497
        %v512 = vadd.f32 %v398, %v498
        %v513 = vadd.f32 %v399, %v499
        %v514 = vadd.f32 %v400, %v500
        %v515 = vadd.f32 %v401, %v501
        %v516 = vadd.f32 %v402, %v502
        %v517 = vadd.f32 %v403, %v503
        %v518 = vadd.f32 %v404, %v504
        %v519 = vadd.f32 %v405, %v505
        %v520 = vadd.f32 %v406, %v506
        %v521 = vadd.f32 %v407, %v507
        %v522 = vadd.f32 %v465, %v494
        %v523 = vadd.f32 %v466, %v495
        %v524 = vadd.f32 %v467, %v496
        %v525 = vadd.f32 %v468, %v497
        %v526 = vadd.f32 %v469, %v498
        %v527 = vadd.f32 %v470, %v499
        %v528 = vadd.f32 %v471, %v500
        %v529 = vadd.f32 %v472, %v501
        %v530 = vadd.f32 %v473, %v502
        %v531 = vadd.f32 %v474, %v503
        %v532 = vadd.f32 %v475, %v504
        %v533 = vadd.f32 %v476, %v505
        %v534 = vadd.f32 %v477, %v506
        %v535 = vadd.f32 %v478, %v507
        %v536 = vmul.f32 %v508, %v508
        %v537 = vmul.f32 %v509, %v509
        %v538 = vmul.f32 %v510, %v510
        %v539 = vmul.f32 %v511, %v511
        %v540 = vmul.f32 %v512, %v512
        %v541 = vmul.f32 %v513, %v513
        %v542 = vmul.f32 %v514, %v514
        %v543 = vmul.f32 %v515, %v515
        %v544 = vmul.f32 %v516, %v516
        %v545 = vmul.f32 %v517, %v517
        %v546 = vmul.f32 %v518, %v518
        %v547 = vmul.f32 %v519, %v519
        %v548 = vmul.f32 %v520, %v520
        %v549 = vmul.f32 %v521, %v521
        %v550 = vmul.f32 %v522, %v522
        %v551 = vmul.f32 %v523, %v523
        %v552 = vmul.f32 %v524, %v524
        %v553 = vmul.f32 %v525, %v525
        %v554 = vmul.f32 %v526, %v526
        %v555 = vmul.f32 %v527, %v527
        %v556 = vmul.f32 %v528, %v528
        %v557 = vmul.f32 %v529, %v529
        %v558 = vmul.f32 %v530, %v530
        %v559 = vmul.f32 %v531, %v531
        %v560 = vmul.f32 %v532, %v532
        %v561 = vmul.f32 %v533, %v533
        %v562 = vmul.f32 %v534, %v534
        %v563 = vmul.f32 %v535, %v535
        %v564 = vadd.f32 %v536, %v550
        %v565 = vadd.f32 %v537, %v551
        %v566 = vadd.f32 %v538, %v552
        %v567 = vadd.f32 %v539, %v553
        %v568 = vadd.f32 %v540, %v554
        %v569 = vadd.f32 %v541, %v555
        %v570 = vadd.f32 %v542, %v556
        %v571 = vadd.f32 %v543, %v557
        %v572 = vadd.f32 %v544, %v558
        %v573 = vadd.f32 %v545, %v559
        %v574 = vadd.f32 %v546, %v560
        %v575 = vadd.f32 %v547, %v561
        %v576 = vadd.f32 %v548, %v562
        %v577 = vadd.f32 %v549, %v563
        %v578 = vrsqrt.pop %v564
        %v579 = vmul.f32 %v578, %v564
        %v580 = vmul.f32 %v579, %v578
        %v581 = vmul.f32 0.5, %v580
        %v582 = vsub.f32 1.5, %v581
        %v583 = vmul.f32 %v578, %v582
        %v584 = vmul.f32 %v564, %v583
        %vm585 = vcmp.eq.f32.partialorder %v564, inf
        %v586 = vsel %vm585, %v564, %v584
        %vm587 = vcmp.eq.f32.partialorder %v564, 0.0
        %v588 = vand.u32 %v564, 2147483648
        %v589 = vsel %vm587, %v588, %v586
        %v590 = vrsqrt.pop %v565
        %v591 = vmul.f32 %v590, %v565
        %v592 = vmul.f32 %v591, %v590
        %v593 = vmul.f32 0.5, %v592
        %v594 = vsub.f32 1.5, %v593
        %v595 = vmul.f32 %v590, %v594
        %v596 = vmul.f32 %v565, %v595
        %vm597 = vcmp.eq.f32.partialorder %v565, inf
        %v598 = vsel %vm597, %v565, %v596
        %vm599 = vcmp.eq.f32.partialorder %v565, 0.0
        %v600 = vand.u32 %v565, 2147483648
        %v601 = vsel %vm599, %v600, %v598
        %v602 = vrsqrt.pop %v566
        %v603 = vmul.f32 %v602, %v566
        %v604 = vmul.f32 %v603, %v602
        %v605 = vmul.f32 0.5, %v604
        %v606 = vsub.f32 1.5, %v605
        %v607 = vmul.f32 %v602, %v606
        %v608 = vmul.f32 %v566, %v607
        %vm609 = vcmp.eq.f32.partialorder %v566, inf
        %v610 = vsel %vm609, %v566, %v608
        %vm611 = vcmp.eq.f32.partialorder %v566, 0.0
        %v612 = vand.u32 %v566, 2147483648
        %v613 = vsel %vm611, %v612, %v610
        %v614 = vrsqrt.pop %v567
        %v615 = vmul.f32 %v614, %v567
        %v616 = vmul.f32 %v615, %v614
        %v617 = vmul.f32 0.5, %v616
        %v618 = vsub.f32 1.5, %v617
        %v619 = vmul.f32 %v614, %v618
        %v620 = vmul.f32 %v567, %v619
        %vm621 = vcmp.eq.f32.partialorder %v567, inf
        %v622 = vsel %vm621, %v567, %v620
        %vm623 = vcmp.eq.f32.partialorder %v567, 0.0
        %v624 = vand.u32 %v567, 2147483648
        %v625 = vsel %vm623, %v624, %v622
        %v626 = vrsqrt.pop %v568
        %v627 = vmul.f32 %v626, %v568
        %v628 = vmul.f32 %v627, %v626
        %v629 = vmul.f32 0.5, %v628
        %v630 = vsub.f32 1.5, %v629
        %v631 = vmul.f32 %v626, %v630
        %v632 = vmul.f32 %v568, %v631
        %vm633 = vcmp.eq.f32.partialorder %v568, inf
        %v634 = vsel %vm633, %v568, %v632
        %vm635 = vcmp.eq.f32.partialorder %v568, 0.0
        %v636 = vand.u32 %v568, 2147483648
        %v637 = vsel %vm635, %v636, %v634
        %v638 = vrsqrt.pop %v569
        %v639 = vmul.f32 %v638, %v569
        %v640 = vmul.f32 %v639, %v638
        %v641 = vmul.f32 0.5, %v640
        %v642 = vsub.f32 1.5, %v641
        %v643 = vmul.f32 %v638, %v642
        %v644 = vmul.f32 %v569, %v643
        %vm645 = vcmp.eq.f32.partialorder %v569, inf
        %v646 = vsel %vm645, %v569, %v644
        %vm647 = vcmp.eq.f32.partialorder %v569, 0.0
        %v648 = vand.u32 %v569, 2147483648
        %v649 = vsel %vm647, %v648, %v646
        %v650 = vrsqrt.pop %v570
        %v651 = vmul.f32 %v650, %v570
        %v652 = vmul.f32 %v651, %v650
        %v653 = vmul.f32 0.5, %v652
        %v654 = vsub.f32 1.5, %v653
        %v655 = vmul.f32 %v650, %v654
        %v656 = vmul.f32 %v570, %v655
        %vm657 = vcmp.eq.f32.partialorder %v570, inf
        %v658 = vsel %vm657, %v570, %v656
        %vm659 = vcmp.eq.f32.partialorder %v570, 0.0
        %v660 = vand.u32 %v570, 2147483648
        %v661 = vsel %vm659, %v660, %v658
        %v662 = vrsqrt.pop %v571
        %v663 = vmul.f32 %v662, %v571
        %v664 = vmul.f32 %v663, %v662
        %v665 = vmul.f32 0.5, %v664
        %v666 = vsub.f32 1.5, %v665
        %v667 = vmul.f32 %v662, %v666
        %v668 = vmul.f32 %v571, %v667
        %vm669 = vcmp.eq.f32.partialorder %v571, inf
        %v670 = vsel %vm669, %v571, %v668
        %vm671 = vcmp.eq.f32.partialorder %v571, 0.0
        %v672 = vand.u32 %v571, 2147483648
        %v673 = vsel %vm671, %v672, %v670
        %v674 = vrsqrt.pop %v572
        %v675 = vmul.f32 %v674, %v572
        %v676 = vmul.f32 %v675, %v674
        %v677 = vmul.f32 0.5, %v676
        %v678 = vsub.f32 1.5, %v677
        %v679 = vmul.f32 %v674, %v678
        %v680 = vmul.f32 %v572, %v679
        %vm681 = vcmp.eq.f32.partialorder %v572, inf
        %v682 = vsel %vm681, %v572, %v680
        %vm683 = vcmp.eq.f32.partialorder %v572, 0.0
        %v684 = vand.u32 %v572, 2147483648
        %v685 = vsel %vm683, %v684, %v682
        %v686 = vrsqrt.pop %v573
        %v687 = vmul.f32 %v686, %v573
        %v688 = vmul.f32 %v687, %v686
        %v689 = vmul.f32 0.5, %v688
        %v690 = vsub.f32 1.5, %v689
        %v691 = vmul.f32 %v686, %v690
        %v692 = vmul.f32 %v573, %v691
        %vm693 = vcmp.eq.f32.partialorder %v573, inf
        %v694 = vsel %vm693, %v573, %v692
        %vm695 = vcmp.eq.f32.partialorder %v573, 0.0
        %v696 = vand.u32 %v573, 2147483648
        %v697 = vsel %vm695, %v696, %v694
        %v698 = vrsqrt.pop %v574
        %v699 = vmul.f32 %v698, %v574
        %v700 = vmul.f32 %v699, %v698
        %v701 = vmul.f32 0.5, %v700
        %v702 = vsub.f32 1.5, %v701
        %v703 = vmul.f32 %v698, %v702
        %v704 = vmul.f32 %v574, %v703
        %vm705 = vcmp.eq.f32.partialorder %v574, inf
        %v706 = vsel %vm705, %v574, %v704
        %vm707 = vcmp.eq.f32.partialorder %v574, 0.0
        %v708 = vand.u32 %v574, 2147483648
        %v709 = vsel %vm707, %v708, %v706
        %v710 = vrsqrt.pop %v575
        %v711 = vmul.f32 %v710, %v575
        %v712 = vmul.f32 %v711, %v710
        %v713 = vmul.f32 0.5, %v712
        %v714 = vsub.f32 1.5, %v713
        %v715 = vmul.f32 %v710, %v714
        %v716 = vmul.f32 %v575, %v715
        %vm717 = vcmp.eq.f32.partialorder %v575, inf
        %v718 = vsel %vm717, %v575, %v716
        %vm719 = vcmp.eq.f32.partialorder %v575, 0.0
        %v720 = vand.u32 %v575, 2147483648
        %v721 = vsel %vm719, %v720, %v718
        %v722 = vrsqrt.pop %v576
        %v723 = vmul.f32 %v722, %v576
        %v724 = vmul.f32 %v723, %v722
        %v725 = vmul.f32 0.5, %v724
        %v726 = vsub.f32 1.5, %v725
        %v727 = vmul.f32 %v722, %v726
        %v728 = vmul.f32 %v576, %v727
        %vm729 = vcmp.eq.f32.partialorder %v576, inf
        %v730 = vsel %vm729, %v576, %v728
        %vm731 = vcmp.eq.f32.partialorder %v576, 0.0
        %v732 = vand.u32 %v576, 2147483648
        %v733 = vsel %vm731, %v732, %v730
        %v734 = vrsqrt.pop %v577
        %v735 = vmul.f32 %v734, %v577
        %v736 = vmul.f32 %v735, %v734
        %v737 = vmul.f32 0.5, %v736
        %v738 = vsub.f32 1.5, %v737
        %v739 = vmul.f32 %v734, %v738
        %v740 = vmul.f32 %v577, %v739
        %vm741 = vcmp.eq.f32.partialorder %v577, inf
        %v742 = vsel %vm741, %v577, %v740
        %vm743 = vcmp.eq.f32.partialorder %v577, 0.0
        %v744 = vand.u32 %v577, 2147483648
        %v745 = vsel %vm743, %v744, %v742
        %v746 = vmax.f32 %v589, 0.0
        %v747 = vmax.f32 %v601, 0.0
        %v748 = vmax.f32 %v613, 0.0
        %v749 = vmax.f32 %v625, 0.0
        %v750 = vmax.f32 %v637, 0.0
        %v751 = vmax.f32 %v649, 0.0
        %v752 = vmax.f32 %v661, 0.0
        %v753 = vmax.f32 %v673, 0.0
        %v754 = vmax.f32 %v685, 0.0
        %v755 = vmax.f32 %v697, 0.0
        %v756 = vmax.f32 %v709, 0.0
        %v757 = vmax.f32 %v721, 0.0
        %v758 = vmax.f32 %v733, 0.0
        %v759 = vmax.f32 %v745, 0.0
        %v760 = vmin.f32 %v746, 1.0
        %v761 = vmin.f32 %v747, 1.0
        %v762 = vmin.f32 %v748, 1.0
        %v763 = vmin.f32 %v749, 1.0
        %v764 = vmin.f32 %v750, 1.0
        %v765 = vmin.f32 %v751, 1.0
        %v766 = vmin.f32 %v752, 1.0
        %v767 = vmin.f32 %v753, 1.0
        %v768 = vmin.f32 %v754, 1.0
        %v769 = vmin.f32 %v755, 1.0
        %v770 = vmin.f32 %v756, 1.0
        %v771 = vmin.f32 %v757, 1.0
        %v772 = vmin.f32 %v758, 1.0
        %v773 = vmin.f32 %v759, 1.0
        %774 = vst [vmem:[%s162] sm:$0xff] %v760
        %775 = vst [vmem:[%s162 + $0x8] sm:$0xff] %v761
        %776 = vst [vmem:[%s162 + $0x10] sm:$0xff] %v762
        %777 = vst [vmem:[%s162 + $0x18] sm:$0xff] %v763
        %778 = vst [vmem:[%s162 + $0x20] sm:$0xff] %v764
        %779 = vst [vmem:[%s162 + $0x28] sm:$0xff] %v765
        %780 = vst [vmem:[%s162 + $0x30] sm:$0xff] %v766
        %781 = vst [vmem:[%s162 + $0x38] sm:$0xff] %v767
        %782 = vst [vmem:[%s162 + $0x40] sm:$0xff] %v768
        %783 = vst [vmem:[%s162 + $0x48] sm:$0xff] %v769
        %784 = vst [vmem:[%s162 + $0x50] sm:$0xff] %v770
        %785 = vst [vmem:[%s162 + $0x58] sm:$0xff] %v771
        %786 = vst [vmem:[%s162 + $0x60] sm:$0xff] %v772
        %787 = vst [vmem:[%s162 + $0x68] sm:$0xff] %v773
        %s788 = sand.u32 %s52, 1
        %s789 = scalar_lea.sflag [#allocation4], %s788
        %s790 = sand.u32 %s52, 1
        %s791 = smul.addr %s790, 112
        %s792 = scalar_lea.vmem [#allocation5], %s791
        // Predicated region
        $region29: #{tpu_custom_call.1} parent=23 // pred_check
          %p793 = pneg %p62
        $region30: #{tpu_custom_call.1} parent=23 // pred_check_branch
          %795 = sbr.rel (%p793) target = $region32
        $region31: #{tpu_custom_call.1} parent=23 // pred_region
          %s796 = smul.u32 2, %s18
          %798 = vsyncadd %s789, 0
          %s799 = smul.addr %s796, 7
          %s800 = smul.addr %s799, 8
          %s801 = scalar_lea.hbm %s1, %s800
          %s802 = sshll.u32 %s792, 4
          %s803 = int_to_ptr.vmem [resolvable:$true] %s802
          %s804 = sshll.u32 %s801, 4
          %s805 = int_to_ptr.hbm [resolvable:$true] %s804
          %810 = dma.vmem_to_hbm [thread:$0]  %s803, 1792, %s805, %s789, 896, 896, 56
        $region32: #{tpu_custom_call.1} parent=23 // pred_fallthru
          _
      $region24: #{tpu_custom_call.1} parent=5 // pred_fallthru
        _
      %p811 = scmp.le.s32.totalorder 2, %s13
      // Predicated region
      $region33: #{tpu_custom_call.1} parent=5 // pred_check
        %p812 = pneg %p811
      $region34: #{tpu_custom_call.1} parent=5 // pred_check_branch
        %814 = sbr.rel (%p812) target = $region36
      $region35: #{tpu_custom_call.1} parent=5 // pred_region
        %s815 = ssub.s32 %s13, 2
        // Predicated region
        $region37: #{tpu_custom_call.1} parent=35 // pred_check
          %p816 = pneg %p68
        $region38: #{tpu_custom_call.1} parent=35 // pred_check_branch
          %818 = sbr.rel (%p816) target = $region40
        $region39: #{tpu_custom_call.1} parent=35 // pred_region
          %s819 = sand.u32 %s53, 1
          %s820 = scalar_lea.sflag [#allocation4], %s819
          %s821 = sand.u32 %s53, 1
          %s822 = smul.addr %s821, 112
          %s823 = scalar_lea.vmem [#allocation5], %s822
          %825 = dma.done %s820, 1792
        $region40: #{tpu_custom_call.1} parent=35 // pred_fallthru
          _
      $region36: #{tpu_custom_call.1} parent=5 // pred_fallthru
        _
    $region6: #{tpu_custom_call.1} parent=1 // loop_footer
      %s17 = sadd.s32 1, %s13
    $region7: #{tpu_custom_call.1} parent=1 // loop_footer_branch
      %12 = sbr.rel target = $region3
    $region8: #{tpu_custom_call.1} parent=1 // loop_exit
      _
    %826 = vsyncpa [#allocation3], 1
    %s827 = scalar_lea.sflag [#allocation3], 1
    %828 = vsyncpa %s827, 1
    %829 = vsyncpa [#allocation4], 1
    %s830 = scalar_lea.sflag [#allocation4], 1
    %831 = vsyncpa %s830, 1

</llo_original>
